<compile_context>
chip_gen: v6e
topology: v6e:2x2x1
jax: 0.10.0
libtpu: 0.0.40
codegen_flags: <defaults>
</compile_context>

<pallas_src>
import math
from typing import NamedTuple

import jax
import jax.numpy as jnp
from jax import lax
from jax.experimental import pallas as pl
from jax.experimental.pallas import tpu as pltpu


def _round_up(x, m):
    return (x + m - 1) // m * m


def _cdiv(a, b):
    return (a + b - 1) // b


def _vmem_capacity_bytes():
    """Physical VMEM of the current TPU generation, with a conservative fallback."""
    try:
        cap = int(pltpu.get_tpu_info().vmem_capacity_bytes)
        if cap >= (16 << 20):
            return cap
    except Exception:
        pass
    return 64 << 20  # v7x-sized conservative default


# ---------------------------------------------------------------------------
# Kernels
# ---------------------------------------------------------------------------

def _gabor_kernel_split(out_p):
    """Per-branch layout: y = [omega(out_p) | scale(out_p)], out_p % 128 == 0."""

    def kernel(x_ref, w_ref, b_ref, o_ref):
        # Single fused matmul for both linears: (tile_m, in_f) @ (in_f, 2*out_p),
        # f32 accumulation on the MXU (native bf16 path if weights/x are bf16).
        y = (
            jnp.dot(x_ref[...], w_ref[...], preferred_element_type=jnp.float32)
            + b_ref[...]
        )
        omega = y[:, :out_p]   # already scaled by omega0 (folded at prep time)
        scale = y[:, out_p:]   # already scaled by sigma0 (folded at prep time)
        o_ref[...] = (jnp.cos(omega) * jnp.exp(-(scale * scale))).astype(o_ref.dtype)

    return kernel


def _gabor_kernel_joint(shift):
    """Joint layout (2*out_f <= 128): one 128-lane tile [omega | scale | pad].

    `shift = width - out_f` rolls the scale half onto lanes [0, out_f) so the
    elementwise tail runs on a single lane tile; roll uses the XLU slot which is
    idle relative to the VALU-bound cos polynomial.
    """

    def kernel(x_ref, w_ref, b_ref, o_ref):
        y = (
            jnp.dot(x_ref[...], w_ref[...], preferred_element_type=jnp.float32)
            + b_ref[...]
        )
        scale = pltpu.roll(y, shift, 1)  # scale_j now in lane j for j < out_f
        o_ref[...] = (jnp.cos(y) * jnp.exp(-(scale * scale))).astype(o_ref.dtype)

    return kernel


# ---------------------------------------------------------------------------
# Parameter packing (do once, reuse across forward calls)
# ---------------------------------------------------------------------------

class GaborParams(NamedTuple):
    w_cat: jax.Array   # (in_f, w_width)  packed / scaled / padded weights
    b_cat: jax.Array   # (1, w_width)     packed / scaled / padded bias (f32)
    out_f: int         # true output features
    out_width: int     # lane-padded output width of the kernel
    joint: bool        # True -> joint 128-lane packing (+roll), False -> split


def prepare_gabor_params(wf, bf, ws, bs, *, omega0=10.0, sigma0=10.0, dtype=None):
    """One-time parameter packing.

    Args:
      wf, ws: (in_features, out_features)  -- already transposed vs. PyTorch.
      bf, bs: (out_features,) or (1, out_features)
      dtype:  weight dtype for the kernel (None -> wf.dtype). bf16 enables the
              native MXU path on v6e/v7x; the fold itself always happens in f32.
    """
    in_f, out_f = wf.shape
    if dtype is None:
        dtype = wf.dtype

    wf32 = jnp.asarray(wf, jnp.float32)
    ws32 = jnp.asarray(ws, jnp.float32)
    bf32 = jnp.reshape(jnp.asarray(bf, jnp.float32), (1, out_f))
    bs32 = jnp.reshape(jnp.asarray(bs, jnp.float32), (1, out_f))

    # Fold the Gabor constants into the linear parameters (in f32).
    wf_s, bf_s = omega0 * wf32, omega0 * bf32
    ws_s, bs_s = sigma0 * ws32, sigma0 * bs32

    joint = (2 * out_f) <= 128
    if joint:
        width = 128
        w_cat = jnp.zeros((in_f, width), jnp.float32)
        w_cat = w_cat.at[:, :out_f].set(wf_s).at[:, out_f:2 * out_f].set(ws_s)
        b_cat = jnp.zeros((1, width), jnp.float32)
        b_cat = b_cat.at[:, :out_f].set(bf_s).at[:, out_f:2 * out_f].set(bs_s)
        out_width = width
    else:
        out_p = _round_up(out_f, 128)
        pad = out_p - out_f
        w_cat = jnp.concatenate(
            [jnp.pad(wf_s, ((0, 0), (0, pad))), jnp.pad(ws_s, ((0, 0), (0, pad)))],
            axis=1)
        b_cat = jnp.concatenate(
            [jnp.pad(bf_s, ((0, 0), (0, pad))), jnp.pad(bs_s, ((0, 0), (0, pad)))],
            axis=1)
        out_width = out_p

    # Bias stays f32 (it is added to the f32 accumulator anyway).
    return GaborParams(w_cat=w_cat.astype(dtype), b_cat=b_cat.astype(jnp.float32),
                       out_f=out_f, out_width=out_width, joint=joint)


# ---------------------------------------------------------------------------
# Tiling / forward
# ---------------------------------------------------------------------------

def _choose_tile_m(N, row_bytes, budget_bytes, row_align, max_tile_m=2048):
    """Largest row tile (aligned) fitting the VMEM budget; keep >=4 grid steps
    for large N (>=2 per v7x TensorCore -> pipelined DMA on both cores), else
    >=2 steps so load/store overlaps compute."""
    cap = max(row_align, (budget_bytes // row_bytes) // row_align * row_align)
    tile = min(max_tile_m, cap, _round_up(N, row_align))
    quarter = _round_up(_cdiv(N, 4), row_align)
    half = _round_up(_cdiv(N, 2), row_align)
    if quarter >= 512:
        tile = min(tile, quarter)
    elif N > row_align:
        tile = min(tile, half)
    return max(row_align, tile)


def real_gabor_forward(x, params, *, max_tile_m=2048, return_padded=False):
    """Fused RealGaborLayer forward using pre-packed params.

    Args:
      x: (N, in_features)
      params: output of prepare_gabor_params(...)
      return_padded: if True, skip the final column slice and return the
        lane-padded (N, out_width) slab (saves an HBM round trip when the
        consumer tolerates padding).
    Returns:
      (N, out_features) in x.dtype (or the padded slab if return_padded).
    """
    w_cat, b_cat = params.w_cat, params.b_cat
    out_f, out_width, joint = params.out_f, params.out_width, params.joint
    N, in_f = x.shape
    w_width = w_cat.shape[1]

    x_bytes = jnp.dtype(x.dtype).itemsize
    out_bytes = x_bytes
    row_align = 16 if x_bytes < 4 else 8  # bf16 sublane packing needs 16-row tiles

    # --- VMEM plan -----------------------------------------------------------
    vmem_cap = _vmem_capacity_bytes()
    usable = min(vmem_cap * 3 // 4, 96 << 20)       # ~48 MiB on v7x, ~96 MiB on v5e/v6e
    w_itemsize = jnp.dtype(w_cat.dtype).itemsize
    # Single-buffered resident weights + f32 bias (sublane-padded allocations).
    w_resident_bytes = _round_up(max(in_f, 8), 8) * w_width * w_itemsize + 8 * w_width * 4
    budget = max(usable - w_resident_bytes - (2 << 20), 4 << 20)

    # Per-row bytes: double-buffered x tile + double-buffered out tile
    # + f32 matmul intermediate y + one f32 temp of the same width (cos/exp tail).
    row_bytes = 2 * in_f * x_bytes + 2 * out_width * out_bytes + 2 * w_width * 4

    tile_m = _choose_tile_m(N, row_bytes, budget, row_align, max_tile_m)
    grid = (pl.cdiv(N, tile_m),)

    plan_bytes = tile_m * row_bytes + w_resident_bytes
    vmem_limit = int(min(max(plan_bytes * 5 // 4 + (2 << 20), 16 << 20), usable))

    kernel = _gabor_kernel_joint(w_width - out_f) if joint else _gabor_kernel_split(out_width)

    out = pl.pallas_call(
        kernel,
        out_shape=jax.ShapeDtypeStruct((N, out_width), x.dtype),
        grid_spec=pltpu.PrefetchScalarGridSpec(
            num_scalar_prefetch=0,
            grid=grid,
            in_specs=[
                pl.BlockSpec((tile_m, in_f), lambda i: (i, 0)),          # x rows (pipelined)
                pl.BlockSpec(memory_space=pltpu.MemorySpace.VMEM),       # [Wf|Ws] resident, 1 copy
                pl.BlockSpec(memory_space=pltpu.MemorySpace.VMEM),       # [bf|bs] resident, 1 copy
            ],
            out_specs=pl.BlockSpec((tile_m, out_width), lambda i: (i, 0)),
        ),
        compiler_params=pltpu.CompilerParams(
            dimension_semantics=("parallel",),   # row tiles shard across v7x TensorCores
            vmem_limit_bytes=vmem_limit,
        ),
    )(x, w_cat, b_cat)

    if return_padded or out_width == out_f:
        return out
    return out[:, :out_f]


# ---------------------------------------------------------------------------
# Demo / self-check
# ---------------------------------------------------------------------------

def _init_linear_params(key, in_features, out_features):
    """Deterministic nn.Linear-style init: U(-1/sqrt(in), 1/sqrt(in))."""
    kw, kb = jax.random.split(key)
    bound = 1.0 / math.sqrt(in_features)
    # Stored as (in_features, out_features) = W^T relative to PyTorch.
    w = jax.random.uniform(kw, (in_features, out_features), jnp.float32, -bound, bound)
    b = jax.random.uniform(kb, (1, out_features), jnp.float32, -bound, bound)
    return w, b


if __name__ == "__main__":
    # Small implicit-representation-style shapes: N coordinate points of
    # dimension in_features mapped to out_features Gabor responses.
    N = 128
    in_features = 16
    out_features = 32
    omega0 = 10.0
    sigma0 = 10.0

    key = jax.random.PRNGKey(0)
    kx, kf, ks = jax.random.split(key, 3)

    x = jax.random.normal(kx, (N, in_features), jnp.float32)
    wf, bf = _init_linear_params(kf, in_features, out_features)  # freqs linear
    ws, bs = _init_linear_params(ks, in_features, out_features)  # scale linear

    # Pack / scale / pad parameters ONCE, reuse for every forward call.
    params = prepare_gabor_params(wf, bf, ws, bs, omega0=omega0, sigma0=sigma0)

    out = jax.block_until_ready(real_gabor_forward(x, params))

    # Reference in plain JAX (same math as the PyTorch module); HIGHEST precision
    # so the f32 reference matmul matches the kernel's f32 MXU accumulation.
    hp = lax.Precision.HIGHEST
    omega_ref = omega0 * (jnp.dot(x, wf, precision=hp) + bf)
    scale_ref = (jnp.dot(x, ws, precision=hp) + bs) * sigma0
    ref = jnp.cos(omega_ref) * jnp.exp(-(scale_ref ** 2))

    assert out.shape == (N, out_features)
    err = float(jnp.max(jnp.abs(out - ref)))
    assert jnp.allclose(out, ref, atol=2e-3, rtol=2e-3), f"max abs err {err}"

    print("KERNEL_OK")
</pallas_src>

<mosaic_0001>
module attributes {stable_mosaic.version = 11 : i64} {
  func.func @kernel(%arg0: i32, %arg1: memref<64x16xf32, #tpu.memory_space<vmem>>, %arg2: memref<16x128xf32, #tpu.memory_space<vmem>>, %arg3: memref<1x128xf32, #tpu.memory_space<vmem>>, %arg4: memref<64x128xf32, #tpu.memory_space<vmem>>) attributes {dimension_semantics = [#tpu.dimension_semantics<parallel>], iteration_bounds = array<i64: 2>, scalar_prefetch = 0 : i64, scratch_operands = 0 : i64, tpu.core_type = #tpu.core_type<tc>, window_params = [{transform_indices = @transform_0, window_bounds = array<i64: 64, 16>}, {pipeline_mode = #tpu.pipeline_mode<synchronous>, transform_indices = @transform_1, window_bounds = array<i64: 16, 128>}, {pipeline_mode = #tpu.pipeline_mode<synchronous>, transform_indices = @transform_2, window_bounds = array<i64: 1, 128>}, {transform_indices = @transform_3, window_bounds = array<i64: 64, 128>}]} {
    %c0 = arith.constant 0 : index
    %c0_0 = arith.constant 0 : index
    %0 = vector.load %arg1[%c0, %c0_0] : memref<64x16xf32, #tpu.memory_space<vmem>>, vector<64x16xf32>
    %c0_1 = arith.constant 0 : index
    %c0_2 = arith.constant 0 : index
    %1 = vector.load %arg2[%c0_1, %c0_2] : memref<16x128xf32, #tpu.memory_space<vmem>>, vector<16x128xf32>
    %cst = arith.constant dense<0.000000e+00> : vector<64x128xf32>
    %2 = tpu.matmul %0, %1, %cst {dimension_numbers = #tpu.dot_dimension_numbers<[1], [0], [0], [1], [0, 0, 1, 1], [], []>} : vector<64x16xf32>, vector<16x128xf32>, vector<64x128xf32> -> vector<64x128xf32>
    %c0_3 = arith.constant 0 : index
    %c0_4 = arith.constant 0 : index
    %3 = vector.load %arg3[%c0_3, %c0_4] : memref<1x128xf32, #tpu.memory_space<vmem>>, vector<1x128xf32>
    %4 = vector.broadcast %3 : vector<1x128xf32> to vector<64x128xf32>
    %5 = arith.addf %2, %4 : vector<64x128xf32>
    %c96_i32 = arith.constant 96 : i32
    %6 = tpu.dynamic_rotate %5 by %c96_i32 dim 1 : vector<64x128xf32>, i32 -> vector<64x128xf32>
    %7 = math.cos %5 : vector<64x128xf32>
    %8 = arith.mulf %6, %6 : vector<64x128xf32>
    %cst_5 = arith.constant 0.000000e+00 : f32
    %9 = vector.broadcast %cst_5 : f32 to vector<64x128xf32>
    %10 = arith.subf %9, %8 : vector<64x128xf32>
    %11 = math.exp %10 : vector<64x128xf32>
    %12 = arith.mulf %7, %11 : vector<64x128xf32>
    %c0_6 = arith.constant 0 : index
    %c0_7 = arith.constant 0 : index
    %13 = vector.load %arg4[%c0_6, %c0_7] : memref<64x128xf32, #tpu.memory_space<vmem>>, vector<64x128xf32>
    tpu.vector_store %arg4[%c0_6, %c0_7], %12 {strides = array<i32>} : memref<64x128xf32, #tpu.memory_space<vmem>>, vector<64x128xf32>,
    return
  }
  func.func @transform_0(%arg0: i32) -> (i32, i32) {
    %c0_i32 = arith.constant 0 : i32
    %c0_i32_0 = arith.constant 0 : i32
    return %arg0, %c0_i32 : i32, i32
  }
  func.func @transform_1(%arg0: i32) -> (i32, i32) {
    %c0_i32 = arith.constant 0 : i32
    %c0_i32_0 = arith.constant 0 : i32
    %c0_i32_1 = arith.constant 0 : i32
    return %c0_i32, %c0_i32_0 : i32, i32
  }
  func.func @transform_2(%arg0: i32) -> (i32, i32) {
    %c0_i32 = arith.constant 0 : i32
    %c0_i32_0 = arith.constant 0 : i32
    %c0_i32_1 = arith.constant 0 : i32
    return %c0_i32, %c0_i32_0 : i32, i32
  }
  func.func @transform_3(%arg0: i32) -> (i32, i32) {
    %c0_i32 = arith.constant 0 : i32
    %c0_i32_0 = arith.constant 0 : i32
    return %arg0, %c0_i32 : i32, i32
  }
}

</mosaic_0001>

<llo_original>
// kernel: tpu_custom_call.1
$region0: #{tpu_custom_call.1}
  #allocation0 [shape = 'u32[]', space=smem, size = 0x4, offset = 0x4, fixed_abs, tag = 'smem constant byte address 0x4 - core index']
  #allocation1 [shape = 'u32[144,128]{1,0:T(1,128)}', space=vmem, size = 0x12000, scoped, tag = 'internal scratch']
  %s0 = inlined_call_operand.vmem [shape: f32[128,16], index: 0, kind: input, shape index: {}]
  %s1 = inlined_call_operand.vmem [shape: f32[16,128], index: 1, kind: input, shape index: {}]
  %s2 = inlined_call_operand.vmem [shape: f32[1,128], index: 2, kind: input, shape index: {}]
  %s3 = inlined_call_operand.hbm [shape: f32[128,128], index: 3, kind: output, shape index: {}]
  %s4 = sld [smem:[#allocation0]]
  $region45: #{tpu_custom_call.1} parent=0
    _
  %s6 = ssub.s32 1, %s4
  %s7 = scalar_select 0, %s6, %s4
  $region1: #{tpu_custom_call.1} parent=0
    #allocation2 [shape = 'u8[65536]{0}', space=vmem, size = 0x10000, scoped, tag = 'output window, operand 0']
    #allocation3 [shape = 's32[2]{0}', space=sflag, size = 0x8, scoped, tag = 'scoped memory for tpu_custom_call.1']
    %8 = vsyncpa [#allocation3], 0
    %s9 = scalar_lea.sflag [#allocation3], 1
    %10 = vsyncpa %s9, 0
    loop: start=0, step=1, limit=4
    $region2: #{tpu_custom_call.1} parent=1 // loop_pre_header
      _
    $region3: #{tpu_custom_call.1} parent=1 // loop_header
      %s12 = sphi 0, %s16
      %p13 = scmp.ge.s32.totalorder %s12, 4
      %s22 = sphi 0, %s24
      %s25 = sphi 0, %s22
      %s26 = sphi 0, %s25
      %s42 = sphi 0, %s26
      %s46 = sphi 0, %s46
      %s48 = sphi 0, %s46
      %s49 = sphi 0, %s48
      %s63 = sphi 0, %s49
      %s67 = sphi 0, %s67
      %s69 = sphi 0, %s67
      %s70 = sphi 0, %s69
      %s84 = sphi 0, %s70
      %s90 = sphi 0, %s92
      %s93 = sphi 0, %s90
      %s94 = sphi 0, %s93
      %s110 = sphi 0, %s94
    $region4: #{tpu_custom_call.1} parent=1 // loop_header_branch
      %15 = sbr.rel (%p13) target = $region8
    $region5: #{tpu_custom_call.1} parent=1 // loop_body
      %s17 = ssub.s32 %s12, 1
      %s18 = ssub.s32 %s12, 2
      %s19 = sadd.s32 %s12, 1
      %s20 = ssub.s32 %s12, %s19
      %p21 = scmp.eq.s32.totalorder %s20, 0
      %s23 = sadd.s32 %s22, 1
      %s24 = scalar_select %p21, %s22, %s23
      %p27 = pneg %p21
      %p28 = scmp.eq.s32.totalorder %s12, 1
      %p29 = por %p27, %p28
      %p30 = scmp.ne.s32.totalorder %s22, %s25
      %p31 = scmp.eq.s32.totalorder %s12, 0
      %p32 = por %p30, %p31
      %p33 = scmp.ne.s32.totalorder %s22, %s25
      %p34 = scmp.eq.s32.totalorder %s17, 1
      %p35 = por %p33, %p34
      %p36 = scmp.ne.s32.totalorder %s25, %s26
      %p37 = scmp.eq.s32.totalorder %s17, 0
      %p38 = por %p36, %p37
      %p39 = scmp.ne.s32.totalorder %s25, %s26
      %p40 = scmp.eq.s32.totalorder %s18, 1
      %p41 = por %p39, %p40
      %p43 = scmp.ne.s32.totalorder %s26, %s42
      %p44 = scmp.eq.s32.totalorder %s18, 0
      %p45 = por %p43, %p44
      %s47 = sadd.s32 %s46, 1
      %p50 = scmp.eq.s32.totalorder %s12, 1
      %p51 = scmp.ne.s32.totalorder %s46, %s48
      %p52 = scmp.eq.s32.totalorder %s12, 0
      %p53 = por %p51, %p52
      %p54 = scmp.ne.s32.totalorder %s46, %s48
      %p55 = scmp.eq.s32.totalorder %s17, 1
      %p56 = por %p54, %p55
      %p57 = scmp.ne.s32.totalorder %s48, %s49
      %p58 = scmp.eq.s32.totalorder %s17, 0
      %p59 = por %p57, %p58
      %p60 = scmp.ne.s32.totalorder %s48, %s49
      %p61 = scmp.eq.s32.totalorder %s18, 1
      %p62 = por %p60, %p61
      %p64 = scmp.ne.s32.totalorder %s49, %s63
      %p65 = scmp.eq.s32.totalorder %s18, 0
      %p66 = por %p64, %p65
      %s68 = sadd.s32 %s67, 1
      %p71 = scmp.eq.s32.totalorder %s12, 1
      %p72 = scmp.ne.s32.totalorder %s67, %s69
      %p73 = scmp.eq.s32.totalorder %s12, 0
      %p74 = por %p72, %p73
      %p75 = scmp.ne.s32.totalorder %s67, %s69
      %p76 = scmp.eq.s32.totalorder %s17, 1
      %p77 = por %p75, %p76
      %p78 = scmp.ne.s32.totalorder %s69, %s70
      %p79 = scmp.eq.s32.totalorder %s17, 0
      %p80 = por %p78, %p79
      %p81 = scmp.ne.s32.totalorder %s69, %s70
      %p82 = scmp.eq.s32.totalorder %s18, 1
      %p83 = por %p81, %p82
      %p85 = scmp.ne.s32.totalorder %s70, %s84
      %p86 = scmp.eq.s32.totalorder %s18, 0
      %p87 = por %p85, %p86
      %s88 = ssub.s32 %s12, %s19
      %p89 = scmp.eq.s32.totalorder %s88, 0
      %s91 = sadd.s32 %s90, 1
      %s92 = scalar_select %p89, %s90, %s91
      %p95 = pneg %p89
      %p96 = scmp.eq.s32.totalorder %s12, 1
      %p97 = por %p95, %p96
      %p98 = scmp.ne.s32.totalorder %s90, %s93
      %p99 = scmp.eq.s32.totalorder %s12, 0
      %p100 = por %p98, %p99
      %p101 = scmp.ne.s32.totalorder %s90, %s93
      %p102 = scmp.eq.s32.totalorder %s17, 1
      %p103 = por %p101, %p102
      %p104 = scmp.ne.s32.totalorder %s93, %s94
      %p105 = scmp.eq.s32.totalorder %s17, 0
      %p106 = por %p104, %p105
      %p107 = scmp.ne.s32.totalorder %s93, %s94
      %p108 = scmp.eq.s32.totalorder %s18, 1
      %p109 = por %p107, %p108
      %p111 = scmp.ne.s32.totalorder %s94, %s110
      %p112 = scmp.eq.s32.totalorder %s18, 0
      %p113 = por %p111, %p112
      %p114 = scmp.le.s32.totalorder 1, %s12
      %p115 = scmp.lt.s32.totalorder %s12, 3
      %p116 = pnand %p114, %p115
      %p117 = pneg %p116
      // Predicated region
      $region9: #{tpu_custom_call.1} parent=5 // pred_check
        _
      $region10: #{tpu_custom_call.1} parent=5 // pred_check_branch
        %119 = sbr.rel (%p116) target = $region12
      $region11: #{tpu_custom_call.1} parent=5 // pred_region
        %s120 = ssub.s32 %s12, 1
        // Predicated region
        $region13: #{tpu_custom_call.1} parent=11 // pred_check
          %p121 = pneg %p59
        $region14: #{tpu_custom_call.1} parent=11 // pred_check_branch
          %123 = sbr.rel (%p121) target = $region16
        $region15: #{tpu_custom_call.1} parent=11 // pred_region
          _
        $region16: #{tpu_custom_call.1} parent=11 // pred_fallthru
          _
        // Predicated region
        $region17: #{tpu_custom_call.1} parent=11 // pred_check
          %p124 = pneg %p80
        $region18: #{tpu_custom_call.1} parent=11 // pred_check_branch
          %126 = sbr.rel (%p124) target = $region20
        $region19: #{tpu_custom_call.1} parent=11 // pred_region
          _
        $region20: #{tpu_custom_call.1} parent=11 // pred_fallthru
          _
      $region12: #{tpu_custom_call.1} parent=5 // pred_fallthru
        _
      %p127 = scmp.lt.s32.totalorder %s12, 2
      // Predicated region
      $region21: #{tpu_custom_call.1} parent=5 // pred_check
        %p128 = pneg %p127
      $region22: #{tpu_custom_call.1} parent=5 // pred_check_branch
        %130 = sbr.rel (%p128) target = $region24
      $region23: #{tpu_custom_call.1} parent=5 // pred_region
        // Predicated region
        $region25: #{tpu_custom_call.1} parent=23 // pred_check
          %p131 = pneg %p32
        $region26: #{tpu_custom_call.1} parent=23 // pred_check_branch
          %133 = sbr.rel (%p131) target = $region28
        $region27: #{tpu_custom_call.1} parent=23 // pred_region
          %s134 = smul.u32 8, %s12
          %p135 = scmp.lt.s32.totalorder %s134, 15
          %s136 = scalar_select %p135, %s134, 15
          %s137 = smul.addr %s136, 8
          %s138 = scalar_lea.vmem %s0, %s137
          %s139 = smul.u32 8, %s12
        $region28: #{tpu_custom_call.1} parent=23 // pred_fallthru
          _
      $region24: #{tpu_custom_call.1} parent=5 // pred_fallthru
        _
      %p140 = scmp.le.s32.totalorder 1, %s12
      %p141 = scmp.lt.s32.totalorder %s12, 3
      %p142 = pnand %p140, %p141
      %p143 = pneg %p142
      // Predicated region
      $region29: #{tpu_custom_call.1} parent=5 // pred_check
        _
      $region30: #{tpu_custom_call.1} parent=5 // pred_check_branch
        %145 = sbr.rel (%p142) target = $region32
      $region31: #{tpu_custom_call.1} parent=5 // pred_region
        %s146 = ssub.s32 %s12, 1
        %s147 = smul.u32 8, %s17
        %p148 = scmp.lt.s32.totalorder %s147, 15
        %s149 = scalar_select %p148, %s147, 15
        %s150 = smul.addr %s149, 8
        %s151 = scalar_lea.vmem %s0, %s150
        %p152 = pneg %p38
        %p153 = pneg %p35
        %p154 = pneg %p59
        %p155 = pneg %p56
        %p156 = pneg %p80
        %p157 = pneg %p77
        %p158 = pneg %p106
        %p159 = pneg %p103
        %s160 = sand.u32 %s93, 1
        %s161 = scalar_lea.sflag [#allocation3], %s160
        %s162 = sand.u32 %s93, 1
        %s163 = smul.addr %s162, 64
        %s164 = scalar_lea.vmem [#allocation2], %s163
        %s165 = smul.u32 8, %s17
        %p166 = scmp.lt.s32.totalorder %s165, 15
        %s167 = scalar_select %p166, %s165, 15
        %s168 = smul.addr %s167, 8
        %s169 = scalar_lea.vmem %s0, %s168
        %s170 = smul.u32 8, %s17
        %s171 = smul.u32 8, %s17
        %v172 = vld [vmem:[%s169] sm:$0xff]
        %v173 = vld [vmem:[%s169 + $0x8] sm:$0xff]
        %v174 = vld [vmem:[%s169 + $0x10] sm:$0xff]
        %v175 = vld [vmem:[%s169 + $0x18] sm:$0xff]
        %v176 = vld [vmem:[%s169 + $0x20] sm:$0xff]
        %v177 = vld [vmem:[%s169 + $0x28] sm:$0xff]
        %v178 = vld [vmem:[%s169 + $0x30] sm:$0xff]
        %v179 = vld [vmem:[%s169 + $0x38] sm:$0xff]
        %v180 = vld [vmem:[%s1] sm:$0xff]
        %v181 = vld [vmem:[%s1 + $0x8] sm:$0xff]
        %v182 = vld [vmem:[%s2] sm:$0x1]
        %v184 = vlaneseq
        %v185 = vshrl.u32 %v184, 7
        %v186 = vsub.s32 0, %v185
        %v187 = vrot.slane %v182, %v186
        %vm189 = vcmask 130048
        %v191 = vsel %vm189, %v172, 0
        %v194 = vsel %vm189, %v173, 0
        %v197 = vsel %vm189, %v174, 0
        %v200 = vsel %vm189, %v175, 0
        %v203 = vsel %vm189, %v176, 0
        %v206 = vsel %vm189, %v177, 0
        %v209 = vsel %vm189, %v178, 0
        %v212 = vsel %vm189, %v179, 0
        %214 = vmatprep.subr.mxu0 0.0
        %215 = vmatpush1.msra.mxu0 0.0
        %216 = vmatprep.subr.mxu0 0.0
        %217 = vmatpush1.msra.mxu0 0.0
        %218 = vmatprep.subr.mxu0 0.0
        %219 = vmatpush1.msra.mxu0 0.0
        %220 = vmatprep.subr.mxu0 0.0
        %221 = vmatpush1.msra.mxu0 0.0
        %222 = vmatprep.subr.mxu0 0.0
        %223 = vmatpush1.msra.mxu0 0.0
        %224 = vmatprep.subr.mxu0 0.0
        %225 = vmatpush1.msra.mxu0 0.0
        %226 = vmatprep.subr.mxu0 0.0
        %227 = vmatpush1.msra.mxu0 0.0
        %228 = vmatprep.subr.mxu0 0.0
        %229 = vmatpush1.msra.mxu0 0.0
        %230 = vmatprep.subr.mxu0 0.0
        %231 = vmatpush1.msra.mxu0 0.0
        %232 = vmatprep.subr.mxu0 0.0
        %233 = vmatpush1.msra.mxu0 0.0
        %234 = vmatprep.subr.mxu0 0.0
        %235 = vmatpush1.msra.mxu0 0.0
        %236 = vmatprep.subr.mxu0 0.0
        %237 = vmatpush1.msra.mxu0 0.0
        %238 = vmatprep.subr.mxu0 0.0
        %239 = vmatpush1.msra.mxu0 0.0
        %240 = vmatprep.subr.mxu0 0.0
        %241 = vmatpush1.msra.mxu0 0.0
        %242 = vmatprep.subr.mxu0 0.0
        %243 = vmatpush1.msra.mxu0 %v181
        %244 = vmatprep.subr.mxu0 0.0
        %245 = vmatpush1.msra.mxu0 %v180
        %246 = vmatprep.subr.mxu0 0.0
        %247 = vmatpush2.msra.mxu0 0.0
        %248 = vmatprep.subr.mxu0 0.0
        %249 = vmatpush2.msra.mxu0 0.0
        %250 = vmatprep.subr.mxu0 0.0
        %251 = vmatpush2.msra.mxu0 0.0
        %252 = vmatprep.subr.mxu0 0.0
        %253 = vmatpush2.msra.mxu0 0.0
        %254 = vmatprep.subr.mxu0 0.0
        %255 = vmatpush2.msra.mxu0 0.0
        %256 = vmatprep.subr.mxu0 0.0
        %257 = vmatpush2.msra.mxu0 0.0
        %258 = vmatprep.subr.mxu0 0.0
        %259 = vmatpush2.msra.mxu0 0.0
        %260 = vmatprep.subr.mxu0 0.0
        %261 = vmatpush2.msra.mxu0 0.0
        %262 = vmatprep.subr.mxu0 0.0
        %263 = vmatpush2.msra.mxu0 0.0
        %264 = vmatprep.subr.mxu0 0.0
        %265 = vmatpush2.msra.mxu0 0.0
        %266 = vmatprep.subr.mxu0 0.0
        %267 = vmatpush2.msra.mxu0 0.0
        %268 = vmatprep.subr.mxu0 0.0
        %269 = vmatpush2.msra.mxu0 0.0
        %270 = vmatprep.subr.mxu0 0.0
        %271 = vmatpush2.msra.mxu0 0.0
        %272 = vmatprep.subr.mxu0 0.0
        %273 = vmatpush2.msra.mxu0 0.0
        %274 = vmatprep.subr.mxu0 0.0
        %275 = vmatpush2.msra.mxu0 0.0
        %276 = vmatprep.subr.mxu0 0.0
        %277 = vmatpush2.msra.mxu0 0.0
        %278 = vmatprep.mubr.f32.mxu0 0.0
        %279 = vmatmul.mubr.f32.gmra.mxu0 %v191
        %v280 = vpop.f32.mrf.mxu0
        %v281 = vadd.f32 %v187, %v280
        %v282 = vpop.f32.mrf.mxu0
        %283 = vmatprep.mubr.f32.mxu0 0.0
        %284 = vmatmul.mubr.f32.gmra.mxu0 %v194
        %v285 = vpop.f32.mrf.mxu0
        %v286 = vadd.f32 %v187, %v285
        %v287 = vpop.f32.mrf.mxu0
        %288 = vmatprep.mubr.f32.mxu0 0.0
        %289 = vmatmul.mubr.f32.gmra.mxu0 %v197
        %v290 = vpop.f32.mrf.mxu0
        %v291 = vadd.f32 %v187, %v290
        %v292 = vpop.f32.mrf.mxu0
        %293 = vmatprep.mubr.f32.mxu0 0.0
        %294 = vmatmul.mubr.f32.gmra.mxu0 %v200
        %v295 = vpop.f32.mrf.mxu0
        %v296 = vadd.f32 %v187, %v295
        %v297 = vpop.f32.mrf.mxu0
        %298 = vmatprep.mubr.f32.mxu0 0.0
        %299 = vmatmul.mubr.f32.gmra.mxu0 %v203
        %v300 = vpop.f32.mrf.mxu0
        %v301 = vadd.f32 %v187, %v300
        %v302 = vpop.f32.mrf.mxu0
        %303 = vmatprep.mubr.f32.mxu0 0.0
        %304 = vmatmul.mubr.f32.gmra.mxu0 %v206
        %v305 = vpop.f32.mrf.mxu0
        %v306 = vadd.f32 %v187, %v305
        %v307 = vpop.f32.mrf.mxu0
        %308 = vmatprep.mubr.f32.mxu0 0.0
        %309 = vmatmul.mubr.f32.gmra.mxu0 %v209
        %v310 = vpop.f32.mrf.mxu0
        %v311 = vadd.f32 %v187, %v310
        %v312 = vpop.f32.mrf.mxu0
        %313 = vmatprep.mubr.f32.mxu0 0.0
        %314 = vmatmul.mubr.f32.gmra.mxu0 %v212
        %v315 = vpop.f32.mrf.mxu0
        %v316 = vadd.f32 %v187, %v315
        %v317 = vpop.f32.mrf.mxu0
        %318 = vdwg.mxu0
        %319 = vrot.lane.b32.xlu0 %v281, 96
        %v320 = vpop.permute.xlu0 %319
        %321 = vrot.lane.b32.xlu0 %v286, 96
        %v322 = vpop.permute.xlu0 %321
        %323 = vrot.lane.b32.xlu0 %v291, 96
        %v324 = vpop.permute.xlu0 %323
        %325 = vrot.lane.b32.xlu0 %v296, 96
        %v326 = vpop.permute.xlu0 %325
        %327 = vrot.lane.b32.xlu0 %v301, 96
        %v328 = vpop.permute.xlu0 %327
        %329 = vrot.lane.b32.xlu0 %v306, 96
        %v330 = vpop.permute.xlu0 %329
        %331 = vrot.lane.b32.xlu0 %v311, 96
        %v332 = vpop.permute.xlu0 %331
        %333 = vrot.lane.b32.xlu0 %v316, 96
        %v334 = vpop.permute.xlu0 %333
        %v335 = vand.u32 2147483647, %v281
        %vm336 = vcmp.le.f32.partialorder %v335, 0.7853982
        %vm337 = vcmp.lt.s32.totalorder %v281, 0
        %v338 = vand.u32 %v281, 2139095040
        %v339 = vshrl.u32 %v338, 23
        %v340 = vsub.s32 %v339, 127
        %v341 = vand.u32 2147483647, %v281
        %v342 = vand.u32 %v341, 8388607
        %v343 = vor.u32 %v342, 8388608
        %v344 = vsub.s32 0, %v343
        %v345 = vadd.s32 %v340, 1
        %vm346 = vcmp.gt.s32.totalorder %v345, 0
        %v347 = vsel %vm346, %v345, 0
        %v348 = vshrl.u32 %v347, 5
        %v349 = vand.u32 %v347, 31
        %v350 = vsub.s32 32, %v349
        %v351 = vshrl.u32 683565275, %v350
        %v352 = vshll.u32 683565275, %v349
        %v353 = vshrl.u32 2475754826, %v350
        %v354 = vor.u32 %v352, %v353
        %v355 = vshll.u32 2475754826, %v349
        %v356 = vshrl.u32 2131351028, %v350
        %v357 = vor.u32 %v355, %v356
        %v358 = vshll.u32 2131351028, %v349
        %v359 = vshrl.u32 2102212464, %v350
        %v360 = vor.u32 %v358, %v359
        %v361 = vshll.u32 2102212464, %v349
        %v362 = vshrl.u32 920167782, %v350
        %v363 = vor.u32 %v361, %v362
        %v364 = vshll.u32 920167782, %v349
        %v365 = vshrl.u32 1326507024, %v350
        %v366 = vor.u32 %v364, %v365
        %vm367 = vcmp.lt.s32.totalorder %v348, 1
        %vm368 = vcmp.lt.s32.totalorder %v348, 2
        %vm369 = vcmp.lt.s32.totalorder %v348, 3
        %vm370 = vcmp.lt.s32.totalorder %v348, 4
        %v371 = vsel %vm367, %v351, %v354
        %v372 = vsel %vm370, %v360, 2102212464
        %v373 = vsel %vm369, %v357, %v372
        %v374 = vsel %vm368, %v371, %v373
        %v375 = vsel %vm367, %v354, %v357
        %v376 = vsel %vm370, %v363, 920167782
        %v377 = vsel %vm369, %v360, %v376
        %v378 = vsel %vm368, %v375, %v377
        %v379 = vsel %vm367, %v357, %v360
        %v380 = vsel %vm370, %v366, 1326507024
        %v381 = vsel %vm369, %v363, %v380
        %v382 = vsel %vm368, %v379, %v381
        %v383 = vshll.u32 %v343, 8
        %v384 = vmul.u32.u64.compose %v383, %v382
        %v385 = vextract.low.u32 %v384
        %v386 = vextract.high.u32 %v384
        %v387 = vmul.u32.u64.compose %v383, %v378
        %v388 = vextract.low.u32 %v387
        %v389 = vextract.high.u32 %v387
        %v390 = vmul.u32 %v383, %v374
        %v391 = vadd.s32 %v386, %v388
        %vm392 = vc.u32 %v386, %v388
        %v393 = vadd.s32 %v389, 1
        %v394 = vsel %vm392, %v393, %v389
        %v395 = vadd.s32 %v390, %v394
        %v396 = vadd.s32 %v395, 536870912
        %v397 = vshrl.u32 %v396, 30
        %v398 = vshll.u32 %v397, 30
        %v399 = vsub.s32 %v395, %v398
        %vm400 = vcmp.lt.s32.totalorder %v399, 0
        %v401 = vsub.s32 0, %v399
        %v402 = vsel %vm400, %v401, %v399
        %v403 = vclz %v402
        %v404 = vsub.s32 %v403, 2
        %vm405 = vcmp.gt.s32.totalorder 0, %v404
        %v406 = vsel %vm405, 0, %v404
        %v407 = vsub.s32 32, %v406
        %v408 = vshll.u32 %v399, %v406
        %v409 = vshrl.u32 %v391, %v407
        %v410 = vor.u32 %v408, %v409
        %v411 = vsub.s32 4294967266, %v406
        %v412 = vadd.s32 %v411, 127
        %v413 = vshll.u32 %v412, 23
        %v414 = vor.u32 4788187, %v413
        %v415 = vand.u32 2147483647, %v414
        %v417 = vcvt.s32.f32 %v410
        %v418 = vmul.f32 %v417, %v415
        %v419 = vxor.u32 %v418, 2147483648
        %v420 = vsel %vm337, %v419, %v418
        %v421 = vsub.s32 4, %v397
        %v422 = vsel %vm337, %v421, %v397
        %v423 = vsel %vm336, %v281, %v420
        %v424 = vsel %vm336, 0, %v422
        %v425 = vcosq.f32.pop %v423
        %v426 = vsinq.f32.pop %v423
        %vm427 = vweird.f32 %v281
        %v428 = vand.u32 %v424, 3
        %vm429 = vcmp.lt.s32.totalorder %v428, 2
        %vm430 = vcmp.eq.s32.totalorder %v428, 0
        %v431 = vxor.u32 %v426, 2147483648
        %v432 = vsel %vm430, %v425, %v431
        %vm433 = vcmp.eq.s32.totalorder %v428, 2
        %v434 = vxor.u32 %v425, 2147483648
        %v435 = vsel %vm433, %v434, %v426
        %v436 = vsel %vm429, %v432, %v435
        %v437 = vsel %vm427, nan, %v436
        %v438 = vand.u32 2147483647, %v286
        %vm439 = vcmp.le.f32.partialorder %v438, 0.7853982
        %vm440 = vcmp.lt.s32.totalorder %v286, 0
        %v441 = vand.u32 %v286, 2139095040
        %v442 = vshrl.u32 %v441, 23
        %v443 = vsub.s32 %v442, 127
        %v444 = vand.u32 2147483647, %v286
        %v445 = vand.u32 %v444, 8388607
        %v446 = vor.u32 %v445, 8388608
        %v447 = vsub.s32 0, %v446
        %v448 = vadd.s32 %v443, 1
        %vm449 = vcmp.gt.s32.totalorder %v448, 0
        %v450 = vsel %vm449, %v448, 0
        %v451 = vshrl.u32 %v450, 5
        %v452 = vand.u32 %v450, 31
        %v453 = vsub.s32 32, %v452
        %v454 = vshrl.u32 683565275, %v453
        %v455 = vshll.u32 683565275, %v452
        %v456 = vshrl.u32 2475754826, %v453
        %v457 = vor.u32 %v455, %v456
        %v458 = vshll.u32 2475754826, %v452
        %v459 = vshrl.u32 2131351028, %v453
        %v460 = vor.u32 %v458, %v459
        %v461 = vshll.u32 2131351028, %v452
        %v462 = vshrl.u32 2102212464, %v453
        %v463 = vor.u32 %v461, %v462
        %v464 = vshll.u32 2102212464, %v452
        %v465 = vshrl.u32 920167782, %v453
        %v466 = vor.u32 %v464, %v465
        %v467 = vshll.u32 920167782, %v452
        %v468 = vshrl.u32 1326507024, %v453
        %v469 = vor.u32 %v467, %v468
        %vm470 = vcmp.lt.s32.totalorder %v451, 1
        %vm471 = vcmp.lt.s32.totalorder %v451, 2
        %vm472 = vcmp.lt.s32.totalorder %v451, 3
        %vm473 = vcmp.lt.s32.totalorder %v451, 4
        %v474 = vsel %vm470, %v454, %v457
        %v475 = vsel %vm473, %v463, 2102212464
        %v476 = vsel %vm472, %v460, %v475
        %v477 = vsel %vm471, %v474, %v476
        %v478 = vsel %vm470, %v457, %v460
        %v479 = vsel %vm473, %v466, 920167782
        %v480 = vsel %vm472, %v463, %v479
        %v481 = vsel %vm471, %v478, %v480
        %v482 = vsel %vm470, %v460, %v463
        %v483 = vsel %vm473, %v469, 1326507024
        %v484 = vsel %vm472, %v466, %v483
        %v485 = vsel %vm471, %v482, %v484
        %v486 = vshll.u32 %v446, 8
        %v487 = vmul.u32.u64.compose %v486, %v485
        %v488 = vextract.low.u32 %v487
        %v489 = vextract.high.u32 %v487
        %v490 = vmul.u32.u64.compose %v486, %v481
        %v491 = vextract.low.u32 %v490
        %v492 = vextract.high.u32 %v490
        %v493 = vmul.u32 %v486, %v477
        %v494 = vadd.s32 %v489, %v491
        %vm495 = vc.u32 %v489, %v491
        %v496 = vadd.s32 %v492, 1
        %v497 = vsel %vm495, %v496, %v492
        %v498 = vadd.s32 %v493, %v497
        %v499 = vadd.s32 %v498, 536870912
        %v500 = vshrl.u32 %v499, 30
        %v501 = vshll.u32 %v500, 30
        %v502 = vsub.s32 %v498, %v501
        %vm503 = vcmp.lt.s32.totalorder %v502, 0
        %v504 = vsub.s32 0, %v502
        %v505 = vsel %vm503, %v504, %v502
        %v506 = vclz %v505
        %v507 = vsub.s32 %v506, 2
        %vm508 = vcmp.gt.s32.totalorder 0, %v507
        %v509 = vsel %vm508, 0, %v507
        %v510 = vsub.s32 32, %v509
        %v511 = vshll.u32 %v502, %v509
        %v512 = vshrl.u32 %v494, %v510
        %v513 = vor.u32 %v511, %v512
        %v514 = vsub.s32 4294967266, %v509
        %v515 = vadd.s32 %v514, 127
        %v516 = vshll.u32 %v515, 23
        %v517 = vor.u32 4788187, %v516
        %v518 = vand.u32 2147483647, %v517
        %v520 = vcvt.s32.f32 %v513
        %v521 = vmul.f32 %v520, %v518
        %v522 = vxor.u32 %v521, 2147483648
        %v523 = vsel %vm440, %v522, %v521
        %v524 = vsub.s32 4, %v500
        %v525 = vsel %vm440, %v524, %v500
        %v526 = vsel %vm439, %v286, %v523
        %v527 = vsel %vm439, 0, %v525
        %v528 = vcosq.f32.pop %v526
        %v529 = vsinq.f32.pop %v526
        %vm530 = vweird.f32 %v286
        %v531 = vand.u32 %v527, 3
        %vm532 = vcmp.lt.s32.totalorder %v531, 2
        %vm533 = vcmp.eq.s32.totalorder %v531, 0
        %v534 = vxor.u32 %v529, 2147483648
        %v535 = vsel %vm533, %v528, %v534
        %vm536 = vcmp.eq.s32.totalorder %v531, 2
        %v537 = vxor.u32 %v528, 2147483648
        %v538 = vsel %vm536, %v537, %v529
        %v539 = vsel %vm532, %v535, %v538
        %v540 = vsel %vm530, nan, %v539
        %v541 = vand.u32 2147483647, %v291
        %vm542 = vcmp.le.f32.partialorder %v541, 0.7853982
        %vm543 = vcmp.lt.s32.totalorder %v291, 0
        %v544 = vand.u32 %v291, 2139095040
        %v545 = vshrl.u32 %v544, 23
        %v546 = vsub.s32 %v545, 127
        %v547 = vand.u32 2147483647, %v291
        %v548 = vand.u32 %v547, 8388607
        %v549 = vor.u32 %v548, 8388608
        %v550 = vsub.s32 0, %v549
        %v551 = vadd.s32 %v546, 1
        %vm552 = vcmp.gt.s32.totalorder %v551, 0
        %v553 = vsel %vm552, %v551, 0
        %v554 = vshrl.u32 %v553, 5
        %v555 = vand.u32 %v553, 31
        %v556 = vsub.s32 32, %v555
        %v557 = vshrl.u32 683565275, %v556
        %v558 = vshll.u32 683565275, %v555
        %v559 = vshrl.u32 2475754826, %v556
        %v560 = vor.u32 %v558, %v559
        %v561 = vshll.u32 2475754826, %v555
        %v562 = vshrl.u32 2131351028, %v556
        %v563 = vor.u32 %v561, %v562
        %v564 = vshll.u32 2131351028, %v555
        %v565 = vshrl.u32 2102212464, %v556
        %v566 = vor.u32 %v564, %v565
        %v567 = vshll.u32 2102212464, %v555
        %v568 = vshrl.u32 920167782, %v556
        %v569 = vor.u32 %v567, %v568
        %v570 = vshll.u32 920167782, %v555
        %v571 = vshrl.u32 1326507024, %v556
        %v572 = vor.u32 %v570, %v571
        %vm573 = vcmp.lt.s32.totalorder %v554, 1
        %vm574 = vcmp.lt.s32.totalorder %v554, 2
        %vm575 = vcmp.lt.s32.totalorder %v554, 3
        %vm576 = vcmp.lt.s32.totalorder %v554, 4
        %v577 = vsel %vm573, %v557, %v560
        %v578 = vsel %vm576, %v566, 2102212464
        %v579 = vsel %vm575, %v563, %v578
        %v580 = vsel %vm574, %v577, %v579
        %v581 = vsel %vm573, %v560, %v563
        %v582 = vsel %vm576, %v569, 920167782
        %v583 = vsel %vm575, %v566, %v582
        %v584 = vsel %vm574, %v581, %v583
        %v585 = vsel %vm573, %v563, %v566
        %v586 = vsel %vm576, %v572, 1326507024
        %v587 = vsel %vm575, %v569, %v586
        %v588 = vsel %vm574, %v585, %v587
        %v589 = vshll.u32 %v549, 8
        %v590 = vmul.u32.u64.compose %v589, %v588
        %v591 = vextract.low.u32 %v590
        %v592 = vextract.high.u32 %v590
        %v593 = vmul.u32.u64.compose %v589, %v584
        %v594 = vextract.low.u32 %v593
        %v595 = vextract.high.u32 %v593
        %v596 = vmul.u32 %v589, %v580
        %v597 = vadd.s32 %v592, %v594
        %vm598 = vc.u32 %v592, %v594
        %v599 = vadd.s32 %v595, 1
        %v600 = vsel %vm598, %v599, %v595
        %v601 = vadd.s32 %v596, %v600
        %v602 = vadd.s32 %v601, 536870912
        %v603 = vshrl.u32 %v602, 30
        %v604 = vshll.u32 %v603, 30
        %v605 = vsub.s32 %v601, %v604
        %vm606 = vcmp.lt.s32.totalorder %v605, 0
        %v607 = vsub.s32 0, %v605
        %v608 = vsel %vm606, %v607, %v605
        %v609 = vclz %v608
        %v610 = vsub.s32 %v609, 2
        %vm611 = vcmp.gt.s32.totalorder 0, %v610
        %v612 = vsel %vm611, 0, %v610
        %v613 = vsub.s32 32, %v612
        %v614 = vshll.u32 %v605, %v612
        %v615 = vshrl.u32 %v597, %v613
        %v616 = vor.u32 %v614, %v615
        %v617 = vsub.s32 4294967266, %v612
        %v618 = vadd.s32 %v617, 127
        %v619 = vshll.u32 %v618, 23
        %v620 = vor.u32 4788187, %v619
        %v621 = vand.u32 2147483647, %v620
        %v623 = vcvt.s32.f32 %v616
        %v624 = vmul.f32 %v623, %v621
        %v625 = vxor.u32 %v624, 2147483648
        %v626 = vsel %vm543, %v625, %v624
        %v627 = vsub.s32 4, %v603
        %v628 = vsel %vm543, %v627, %v603
        %v629 = vsel %vm542, %v291, %v626
        %v630 = vsel %vm542, 0, %v628
        %v631 = vcosq.f32.pop %v629
        %v632 = vsinq.f32.pop %v629
        %vm633 = vweird.f32 %v291
        %v634 = vand.u32 %v630, 3
        %vm635 = vcmp.lt.s32.totalorder %v634, 2
        %vm636 = vcmp.eq.s32.totalorder %v634, 0
        %v637 = vxor.u32 %v632, 2147483648
        %v638 = vsel %vm636, %v631, %v637
        %vm639 = vcmp.eq.s32.totalorder %v634, 2
        %v640 = vxor.u32 %v631, 2147483648
        %v641 = vsel %vm639, %v640, %v632
        %v642 = vsel %vm635, %v638, %v641
        %v643 = vsel %vm633, nan, %v642
        %v644 = vand.u32 2147483647, %v296
        %vm645 = vcmp.le.f32.partialorder %v644, 0.7853982
        %vm646 = vcmp.lt.s32.totalorder %v296, 0
        %v647 = vand.u32 %v296, 2139095040
        %v648 = vshrl.u32 %v647, 23
        %v649 = vsub.s32 %v648, 127
        %v650 = vand.u32 2147483647, %v296
        %v651 = vand.u32 %v650, 8388607
        %v652 = vor.u32 %v651, 8388608
        %v653 = vsub.s32 0, %v652
        %v654 = vadd.s32 %v649, 1
        %vm655 = vcmp.gt.s32.totalorder %v654, 0
        %v656 = vsel %vm655, %v654, 0
        %v657 = vshrl.u32 %v656, 5
        %v658 = vand.u32 %v656, 31
        %v659 = vsub.s32 32, %v658
        %v660 = vshrl.u32 683565275, %v659
        %v661 = vshll.u32 683565275, %v658
        %v662 = vshrl.u32 2475754826, %v659
        %v663 = vor.u32 %v661, %v662
        %v664 = vshll.u32 2475754826, %v658
        %v665 = vshrl.u32 2131351028, %v659
        %v666 = vor.u32 %v664, %v665
        %v667 = vshll.u32 2131351028, %v658
        %v668 = vshrl.u32 2102212464, %v659
        %v669 = vor.u32 %v667, %v668
        %v670 = vshll.u32 2102212464, %v658
        %v671 = vshrl.u32 920167782, %v659
        %v672 = vor.u32 %v670, %v671
        %v673 = vshll.u32 920167782, %v658
        %v674 = vshrl.u32 1326507024, %v659
        %v675 = vor.u32 %v673, %v674
        %vm676 = vcmp.lt.s32.totalorder %v657, 1
        %vm677 = vcmp.lt.s32.totalorder %v657, 2
        %vm678 = vcmp.lt.s32.totalorder %v657, 3
        %vm679 = vcmp.lt.s32.totalorder %v657, 4
        %v680 = vsel %vm676, %v660, %v663
        %v681 = vsel %vm679, %v669, 2102212464
        %v682 = vsel %vm678, %v666, %v681
        %v683 = vsel %vm677, %v680, %v682
        %v684 = vsel %vm676, %v663, %v666
        %v685 = vsel %vm679, %v672, 920167782
        %v686 = vsel %vm678, %v669, %v685
        %v687 = vsel %vm677, %v684, %v686
        %v688 = vsel %vm676, %v666, %v669
        %v689 = vsel %vm679, %v675, 1326507024
        %v690 = vsel %vm678, %v672, %v689
        %v691 = vsel %vm677, %v688, %v690
        %v692 = vshll.u32 %v652, 8
        %v693 = vmul.u32.u64.compose %v692, %v691
        %v694 = vextract.low.u32 %v693
        %v695 = vextract.high.u32 %v693
        %v696 = vmul.u32.u64.compose %v692, %v687
        %v697 = vextract.low.u32 %v696
        %v698 = vextract.high.u32 %v696
        %v699 = vmul.u32 %v692, %v683
        %v700 = vadd.s32 %v695, %v697
        %vm701 = vc.u32 %v695, %v697
        %v702 = vadd.s32 %v698, 1
        %v703 = vsel %vm701, %v702, %v698
        %v704 = vadd.s32 %v699, %v703
        %v705 = vadd.s32 %v704, 536870912
        %v706 = vshrl.u32 %v705, 30
        %v707 = vshll.u32 %v706, 30
        %v708 = vsub.s32 %v704, %v707
        %vm709 = vcmp.lt.s32.totalorder %v708, 0
        %v710 = vsub.s32 0, %v708
        %v711 = vsel %vm709, %v710, %v708
        %v712 = vclz %v711
        %v713 = vsub.s32 %v712, 2
        %vm714 = vcmp.gt.s32.totalorder 0, %v713
        %v715 = vsel %vm714, 0, %v713
        %v716 = vsub.s32 32, %v715
        %v717 = vshll.u32 %v708, %v715
        %v718 = vshrl.u32 %v700, %v716
        %v719 = vor.u32 %v717, %v718
        %v720 = vsub.s32 4294967266, %v715
        %v721 = vadd.s32 %v720, 127
        %v722 = vshll.u32 %v721, 23
        %v723 = vor.u32 4788187, %v722
        %v724 = vand.u32 2147483647, %v723
        %v726 = vcvt.s32.f32 %v719
        %v727 = vmul.f32 %v726, %v724
        %v728 = vxor.u32 %v727, 2147483648
        %v729 = vsel %vm646, %v728, %v727
        %v730 = vsub.s32 4, %v706
        %v731 = vsel %vm646, %v730, %v706
        %v732 = vsel %vm645, %v296, %v729
        %v733 = vsel %vm645, 0, %v731
        %v734 = vcosq.f32.pop %v732
        %v735 = vsinq.f32.pop %v732
        %vm736 = vweird.f32 %v296
        %v737 = vand.u32 %v733, 3
        %vm738 = vcmp.lt.s32.totalorder %v737, 2
        %vm739 = vcmp.eq.s32.totalorder %v737, 0
        %v740 = vxor.u32 %v735, 2147483648
        %v741 = vsel %vm739, %v734, %v740
        %vm742 = vcmp.eq.s32.totalorder %v737, 2
        %v743 = vxor.u32 %v734, 2147483648
        %v744 = vsel %vm742, %v743, %v735
        %v745 = vsel %vm738, %v741, %v744
        %v746 = vsel %vm736, nan, %v745
        %v747 = vand.u32 2147483647, %v301
        %vm748 = vcmp.le.f32.partialorder %v747, 0.7853982
        %vm749 = vcmp.lt.s32.totalorder %v301, 0
        %v750 = vand.u32 %v301, 2139095040
        %v751 = vshrl.u32 %v750, 23
        %v752 = vsub.s32 %v751, 127
        %v753 = vand.u32 2147483647, %v301
        %v754 = vand.u32 %v753, 8388607
        %v755 = vor.u32 %v754, 8388608
        %v756 = vsub.s32 0, %v755
        %v757 = vadd.s32 %v752, 1
        %vm758 = vcmp.gt.s32.totalorder %v757, 0
        %v759 = vsel %vm758, %v757, 0
        %v760 = vshrl.u32 %v759, 5
        %v761 = vand.u32 %v759, 31
        %v762 = vsub.s32 32, %v761
        %v763 = vshrl.u32 683565275, %v762
        %v764 = vshll.u32 683565275, %v761
        %v765 = vshrl.u32 2475754826, %v762
        %v766 = vor.u32 %v764, %v765
        %v767 = vshll.u32 2475754826, %v761
        %v768 = vshrl.u32 2131351028, %v762
        %v769 = vor.u32 %v767, %v768
        %v770 = vshll.u32 2131351028, %v761
        %v771 = vshrl.u32 2102212464, %v762
        %v772 = vor.u32 %v770, %v771
        %v773 = vshll.u32 2102212464, %v761
        %v774 = vshrl.u32 920167782, %v762
        %v775 = vor.u32 %v773, %v774
        %v776 = vshll.u32 920167782, %v761
        %v777 = vshrl.u32 1326507024, %v762
        %v778 = vor.u32 %v776, %v777
        %vm779 = vcmp.lt.s32.totalorder %v760, 1
        %vm780 = vcmp.lt.s32.totalorder %v760, 2
        %vm781 = vcmp.lt.s32.totalorder %v760, 3
        %vm782 = vcmp.lt.s32.totalorder %v760, 4
        %v783 = vsel %vm779, %v763, %v766
        %v784 = vsel %vm782, %v772, 2102212464
        %v785 = vsel %vm781, %v769, %v784
        %v786 = vsel %vm780, %v783, %v785
        %v787 = vsel %vm779, %v766, %v769
        %v788 = vsel %vm782, %v775, 920167782
        %v789 = vsel %vm781, %v772, %v788
        %v790 = vsel %vm780, %v787, %v789
        %v791 = vsel %vm779, %v769, %v772
        %v792 = vsel %vm782, %v778, 1326507024
        %v793 = vsel %vm781, %v775, %v792
        %v794 = vsel %vm780, %v791, %v793
        %v795 = vshll.u32 %v755, 8
        %v796 = vmul.u32.u64.compose %v795, %v794
        %v797 = vextract.low.u32 %v796
        %v798 = vextract.high.u32 %v796
        %v799 = vmul.u32.u64.compose %v795, %v790
        %v800 = vextract.low.u32 %v799
        %v801 = vextract.high.u32 %v799
        %v802 = vmul.u32 %v795, %v786
        %v803 = vadd.s32 %v798, %v800
        %vm804 = vc.u32 %v798, %v800
        %v805 = vadd.s32 %v801, 1
        %v806 = vsel %vm804, %v805, %v801
        %v807 = vadd.s32 %v802, %v806
        %v808 = vadd.s32 %v807, 536870912
        %v809 = vshrl.u32 %v808, 30
        %v810 = vshll.u32 %v809, 30
        %v811 = vsub.s32 %v807, %v810
        %vm812 = vcmp.lt.s32.totalorder %v811, 0
        %v813 = vsub.s32 0, %v811
        %v814 = vsel %vm812, %v813, %v811
        %v815 = vclz %v814
        %v816 = vsub.s32 %v815, 2
        %vm817 = vcmp.gt.s32.totalorder 0, %v816
        %v818 = vsel %vm817, 0, %v816
        %v819 = vsub.s32 32, %v818
        %v820 = vshll.u32 %v811, %v818
        %v821 = vshrl.u32 %v803, %v819
        %v822 = vor.u32 %v820, %v821
        %v823 = vsub.s32 4294967266, %v818
        %v824 = vadd.s32 %v823, 127
        %v825 = vshll.u32 %v824, 23
        %v826 = vor.u32 4788187, %v825
        %v827 = vand.u32 2147483647, %v826
        %v829 = vcvt.s32.f32 %v822
        %v830 = vmul.f32 %v829, %v827
        %v831 = vxor.u32 %v830, 2147483648
        %v832 = vsel %vm749, %v831, %v830
        %v833 = vsub.s32 4, %v809
        %v834 = vsel %vm749, %v833, %v809
        %v835 = vsel %vm748, %v301, %v832
        %v836 = vsel %vm748, 0, %v834
        %v837 = vcosq.f32.pop %v835
        %v838 = vsinq.f32.pop %v835
        %vm839 = vweird.f32 %v301
        %v840 = vand.u32 %v836, 3
        %vm841 = vcmp.lt.s32.totalorder %v840, 2
        %vm842 = vcmp.eq.s32.totalorder %v840, 0
        %v843 = vxor.u32 %v838, 2147483648
        %v844 = vsel %vm842, %v837, %v843
        %vm845 = vcmp.eq.s32.totalorder %v840, 2
        %v846 = vxor.u32 %v837, 2147483648
        %v847 = vsel %vm845, %v846, %v838
        %v848 = vsel %vm841, %v844, %v847
        %v849 = vsel %vm839, nan, %v848
        %v850 = vand.u32 2147483647, %v306
        %vm851 = vcmp.le.f32.partialorder %v850, 0.7853982
        %vm852 = vcmp.lt.s32.totalorder %v306, 0
        %v853 = vand.u32 %v306, 2139095040
        %v854 = vshrl.u32 %v853, 23
        %v855 = vsub.s32 %v854, 127
        %v856 = vand.u32 2147483647, %v306
        %v857 = vand.u32 %v856, 8388607
        %v858 = vor.u32 %v857, 8388608
        %v859 = vsub.s32 0, %v858
        %v860 = vadd.s32 %v855, 1
        %vm861 = vcmp.gt.s32.totalorder %v860, 0
        %v862 = vsel %vm861, %v860, 0
        %v863 = vshrl.u32 %v862, 5
        %v864 = vand.u32 %v862, 31
        %v865 = vsub.s32 32, %v864
        %v866 = vshrl.u32 683565275, %v865
        %v867 = vshll.u32 683565275, %v864
        %v868 = vshrl.u32 2475754826, %v865
        %v869 = vor.u32 %v867, %v868
        %v870 = vshll.u32 2475754826, %v864
        %v871 = vshrl.u32 2131351028, %v865
        %v872 = vor.u32 %v870, %v871
        %v873 = vshll.u32 2131351028, %v864
        %v874 = vshrl.u32 2102212464, %v865
        %v875 = vor.u32 %v873, %v874
        %v876 = vshll.u32 2102212464, %v864
        %v877 = vshrl.u32 920167782, %v865
        %v878 = vor.u32 %v876, %v877
        %v879 = vshll.u32 920167782, %v864
        %v880 = vshrl.u32 1326507024, %v865
        %v881 = vor.u32 %v879, %v880
        %vm882 = vcmp.lt.s32.totalorder %v863, 1
        %vm883 = vcmp.lt.s32.totalorder %v863, 2
        %vm884 = vcmp.lt.s32.totalorder %v863, 3
        %vm885 = vcmp.lt.s32.totalorder %v863, 4
        %v886 = vsel %vm882, %v866, %v869
        %v887 = vsel %vm885, %v875, 2102212464
        %v888 = vsel %vm884, %v872, %v887
        %v889 = vsel %vm883, %v886, %v888
        %v890 = vsel %vm882, %v869, %v872
        %v891 = vsel %vm885, %v878, 920167782
        %v892 = vsel %vm884, %v875, %v891
        %v893 = vsel %vm883, %v890, %v892
        %v894 = vsel %vm882, %v872, %v875
        %v895 = vsel %vm885, %v881, 1326507024
        %v896 = vsel %vm884, %v878, %v895
        %v897 = vsel %vm883, %v894, %v896
        %v898 = vshll.u32 %v858, 8
        %v899 = vmul.u32.u64.compose %v898, %v897
        %v900 = vextract.low.u32 %v899
        %v901 = vextract.high.u32 %v899
        %v902 = vmul.u32.u64.compose %v898, %v893
        %v903 = vextract.low.u32 %v902
        %v904 = vextract.high.u32 %v902
        %v905 = vmul.u32 %v898, %v889
        %v906 = vadd.s32 %v901, %v903
        %vm907 = vc.u32 %v901, %v903
        %v908 = vadd.s32 %v904, 1
        %v909 = vsel %vm907, %v908, %v904
        %v910 = vadd.s32 %v905, %v909
        %v911 = vadd.s32 %v910, 536870912
        %v912 = vshrl.u32 %v911, 30
        %v913 = vshll.u32 %v912, 30
        %v914 = vsub.s32 %v910, %v913
        %vm915 = vcmp.lt.s32.totalorder %v914, 0
        %v916 = vsub.s32 0, %v914
        %v917 = vsel %vm915, %v916, %v914
        %v918 = vclz %v917
        %v919 = vsub.s32 %v918, 2
        %vm920 = vcmp.gt.s32.totalorder 0, %v919
        %v921 = vsel %vm920, 0, %v919
        %v922 = vsub.s32 32, %v921
        %v923 = vshll.u32 %v914, %v921
        %v924 = vshrl.u32 %v906, %v922
        %v925 = vor.u32 %v923, %v924
        %v926 = vsub.s32 4294967266, %v921
        %v927 = vadd.s32 %v926, 127
        %v928 = vshll.u32 %v927, 23
        %v929 = vor.u32 4788187, %v928
        %v930 = vand.u32 2147483647, %v929
        %v932 = vcvt.s32.f32 %v925
        %v933 = vmul.f32 %v932, %v930
        %v934 = vxor.u32 %v933, 2147483648
        %v935 = vsel %vm852, %v934, %v933
        %v936 = vsub.s32 4, %v912
        %v937 = vsel %vm852, %v936, %v912
        %v938 = vsel %vm851, %v306, %v935
        %v939 = vsel %vm851, 0, %v937
        %v940 = vcosq.f32.pop %v938
        %v941 = vsinq.f32.pop %v938
        %vm942 = vweird.f32 %v306
        %v943 = vand.u32 %v939, 3
        %vm944 = vcmp.lt.s32.totalorder %v943, 2
        %vm945 = vcmp.eq.s32.totalorder %v943, 0
        %v946 = vxor.u32 %v941, 2147483648
        %v947 = vsel %vm945, %v940, %v946
        %vm948 = vcmp.eq.s32.totalorder %v943, 2
        %v949 = vxor.u32 %v940, 2147483648
        %v950 = vsel %vm948, %v949, %v941
        %v951 = vsel %vm944, %v947, %v950
        %v952 = vsel %vm942, nan, %v951
        %v953 = vand.u32 2147483647, %v311
        %vm954 = vcmp.le.f32.partialorder %v953, 0.7853982
        %vm955 = vcmp.lt.s32.totalorder %v311, 0
        %v956 = vand.u32 %v311, 2139095040
        %v957 = vshrl.u32 %v956, 23
        %v958 = vsub.s32 %v957, 127
        %v959 = vand.u32 2147483647, %v311
        %v960 = vand.u32 %v959, 8388607
        %v961 = vor.u32 %v960, 8388608
        %v962 = vsub.s32 0, %v961
        %v963 = vadd.s32 %v958, 1
        %vm964 = vcmp.gt.s32.totalorder %v963, 0
        %v965 = vsel %vm964, %v963, 0
        %v966 = vshrl.u32 %v965, 5
        %v967 = vand.u32 %v965, 31
        %v968 = vsub.s32 32, %v967
        %v969 = vshrl.u32 683565275, %v968
        %v970 = vshll.u32 683565275, %v967
        %v971 = vshrl.u32 2475754826, %v968
        %v972 = vor.u32 %v970, %v971
        %v973 = vshll.u32 2475754826, %v967
        %v974 = vshrl.u32 2131351028, %v968
        %v975 = vor.u32 %v973, %v974
        %v976 = vshll.u32 2131351028, %v967
        %v977 = vshrl.u32 2102212464, %v968
        %v978 = vor.u32 %v976, %v977
        %v979 = vshll.u32 2102212464, %v967
        %v980 = vshrl.u32 920167782, %v968
        %v981 = vor.u32 %v979, %v980
        %v982 = vshll.u32 920167782, %v967
        %v983 = vshrl.u32 1326507024, %v968
        %v984 = vor.u32 %v982, %v983
        %vm985 = vcmp.lt.s32.totalorder %v966, 1
        %vm986 = vcmp.lt.s32.totalorder %v966, 2
        %vm987 = vcmp.lt.s32.totalorder %v966, 3
        %vm988 = vcmp.lt.s32.totalorder %v966, 4
        %v989 = vsel %vm985, %v969, %v972
        %v990 = vsel %vm988, %v978, 2102212464
        %v991 = vsel %vm987, %v975, %v990
        %v992 = vsel %vm986, %v989, %v991
        %v993 = vsel %vm985, %v972, %v975
        %v994 = vsel %vm988, %v981, 920167782
        %v995 = vsel %vm987, %v978, %v994
        %v996 = vsel %vm986, %v993, %v995
        %v997 = vsel %vm985, %v975, %v978
        %v998 = vsel %vm988, %v984, 1326507024
        %v999 = vsel %vm987, %v981, %v998
        %v1000 = vsel %vm986, %v997, %v999
        %v1001 = vshll.u32 %v961, 8
        %v1002 = vmul.u32.u64.compose %v1001, %v1000
        %v1003 = vextract.low.u32 %v1002
        %v1004 = vextract.high.u32 %v1002
        %v1005 = vmul.u32.u64.compose %v1001, %v996
        %v1006 = vextract.low.u32 %v1005
        %v1007 = vextract.high.u32 %v1005
        %v1008 = vmul.u32 %v1001, %v992
        %v1009 = vadd.s32 %v1004, %v1006
        %vm1010 = vc.u32 %v1004, %v1006
        %v1011 = vadd.s32 %v1007, 1
        %v1012 = vsel %vm1010, %v1011, %v1007
        %v1013 = vadd.s32 %v1008, %v1012
        %v1014 = vadd.s32 %v1013, 536870912
        %v1015 = vshrl.u32 %v1014, 30
        %v1016 = vshll.u32 %v1015, 30
        %v1017 = vsub.s32 %v1013, %v1016
        %vm1018 = vcmp.lt.s32.totalorder %v1017, 0
        %v1019 = vsub.s32 0, %v1017
        %v1020 = vsel %vm1018, %v1019, %v1017
        %v1021 = vclz %v1020
        %v1022 = vsub.s32 %v1021, 2
        %vm1023 = vcmp.gt.s32.totalorder 0, %v1022
        %v1024 = vsel %vm1023, 0, %v1022
        %v1025 = vsub.s32 32, %v1024
        %v1026 = vshll.u32 %v1017, %v1024
        %v1027 = vshrl.u32 %v1009, %v1025
        %v1028 = vor.u32 %v1026, %v1027
        %v1029 = vsub.s32 4294967266, %v1024
        %v1030 = vadd.s32 %v1029, 127
        %v1031 = vshll.u32 %v1030, 23
        %v1032 = vor.u32 4788187, %v1031
        %v1033 = vand.u32 2147483647, %v1032
        %v1035 = vcvt.s32.f32 %v1028
        %v1036 = vmul.f32 %v1035, %v1033
        %v1037 = vxor.u32 %v1036, 2147483648
        %v1038 = vsel %vm955, %v1037, %v1036
        %v1039 = vsub.s32 4, %v1015
        %v1040 = vsel %vm955, %v1039, %v1015
        %v1041 = vsel %vm954, %v311, %v1038
        %v1042 = vsel %vm954, 0, %v1040
        %v1043 = vcosq.f32.pop %v1041
        %v1044 = vsinq.f32.pop %v1041
        %vm1045 = vweird.f32 %v311
        %v1046 = vand.u32 %v1042, 3
        %vm1047 = vcmp.lt.s32.totalorder %v1046, 2
        %vm1048 = vcmp.eq.s32.totalorder %v1046, 0
        %v1049 = vxor.u32 %v1044, 2147483648
        %v1050 = vsel %vm1048, %v1043, %v1049
        %vm1051 = vcmp.eq.s32.totalorder %v1046, 2
        %v1052 = vxor.u32 %v1043, 2147483648
        %v1053 = vsel %vm1051, %v1052, %v1044
        %v1054 = vsel %vm1047, %v1050, %v1053
        %v1055 = vsel %vm1045, nan, %v1054
        %v1056 = vand.u32 2147483647, %v316
        %vm1057 = vcmp.le.f32.partialorder %v1056, 0.7853982
        %vm1058 = vcmp.lt.s32.totalorder %v316, 0
        %v1059 = vand.u32 %v316, 2139095040
        %v1060 = vshrl.u32 %v1059, 23
        %v1061 = vsub.s32 %v1060, 127
        %v1062 = vand.u32 2147483647, %v316
        %v1063 = vand.u32 %v1062, 8388607
        %v1064 = vor.u32 %v1063, 8388608
        %v1065 = vsub.s32 0, %v1064
        %v1066 = vadd.s32 %v1061, 1
        %vm1067 = vcmp.gt.s32.totalorder %v1066, 0
        %v1068 = vsel %vm1067, %v1066, 0
        %v1069 = vshrl.u32 %v1068, 5
        %v1070 = vand.u32 %v1068, 31
        %v1071 = vsub.s32 32, %v1070
        %v1072 = vshrl.u32 683565275, %v1071
        %v1073 = vshll.u32 683565275, %v1070
        %v1074 = vshrl.u32 2475754826, %v1071
        %v1075 = vor.u32 %v1073, %v1074
        %v1076 = vshll.u32 2475754826, %v1070
        %v1077 = vshrl.u32 2131351028, %v1071
        %v1078 = vor.u32 %v1076, %v1077
        %v1079 = vshll.u32 2131351028, %v1070
        %v1080 = vshrl.u32 2102212464, %v1071
        %v1081 = vor.u32 %v1079, %v1080
        %v1082 = vshll.u32 2102212464, %v1070
        %v1083 = vshrl.u32 920167782, %v1071
        %v1084 = vor.u32 %v1082, %v1083
        %v1085 = vshll.u32 920167782, %v1070
        %v1086 = vshrl.u32 1326507024, %v1071
        %v1087 = vor.u32 %v1085, %v1086
        %vm1088 = vcmp.lt.s32.totalorder %v1069, 1
        %vm1089 = vcmp.lt.s32.totalorder %v1069, 2
        %vm1090 = vcmp.lt.s32.totalorder %v1069, 3
        %vm1091 = vcmp.lt.s32.totalorder %v1069, 4
        %v1092 = vsel %vm1088, %v1072, %v1075
        %v1093 = vsel %vm1091, %v1081, 2102212464
        %v1094 = vsel %vm1090, %v1078, %v1093
        %v1095 = vsel %vm1089, %v1092, %v1094
        %v1096 = vsel %vm1088, %v1075, %v1078
        %v1097 = vsel %vm1091, %v1084, 920167782
        %v1098 = vsel %vm1090, %v1081, %v1097
        %v1099 = vsel %vm1089, %v1096, %v1098
        %v1100 = vsel %vm1088, %v1078, %v1081
        %v1101 = vsel %vm1091, %v1087, 1326507024
        %v1102 = vsel %vm1090, %v1084, %v1101
        %v1103 = vsel %vm1089, %v1100, %v1102
        %v1104 = vshll.u32 %v1064, 8
        %v1105 = vmul.u32.u64.compose %v1104, %v1103
        %v1106 = vextract.low.u32 %v1105
        %v1107 = vextract.high.u32 %v1105
        %v1108 = vmul.u32.u64.compose %v1104, %v1099
        %v1109 = vextract.low.u32 %v1108
        %v1110 = vextract.high.u32 %v1108
        %v1111 = vmul.u32 %v1104, %v1095
        %v1112 = vadd.s32 %v1107, %v1109
        %vm1113 = vc.u32 %v1107, %v1109
        %v1114 = vadd.s32 %v1110, 1
        %v1115 = vsel %vm1113, %v1114, %v1110
        %v1116 = vadd.s32 %v1111, %v1115
        %v1117 = vadd.s32 %v1116, 536870912
        %v1118 = vshrl.u32 %v1117, 30
        %v1119 = vshll.u32 %v1118, 30
        %v1120 = vsub.s32 %v1116, %v1119
        %vm1121 = vcmp.lt.s32.totalorder %v1120, 0
        %v1122 = vsub.s32 0, %v1120
        %v1123 = vsel %vm1121, %v1122, %v1120
        %v1124 = vclz %v1123
        %v1125 = vsub.s32 %v1124, 2
        %vm1126 = vcmp.gt.s32.totalorder 0, %v1125
        %v1127 = vsel %vm1126, 0, %v1125
        %v1128 = vsub.s32 32, %v1127
        %v1129 = vshll.u32 %v1120, %v1127
        %v1130 = vshrl.u32 %v1112, %v1128
        %v1131 = vor.u32 %v1129, %v1130
        %v1132 = vsub.s32 4294967266, %v1127
        %v1133 = vadd.s32 %v1132, 127
        %v1134 = vshll.u32 %v1133, 23
        %v1135 = vor.u32 4788187, %v1134
        %v1136 = vand.u32 2147483647, %v1135
        %v1138 = vcvt.s32.f32 %v1131
        %v1139 = vmul.f32 %v1138, %v1136
        %v1140 = vxor.u32 %v1139, 2147483648
        %v1141 = vsel %vm1058, %v1140, %v1139
        %v1142 = vsub.s32 4, %v1118
        %v1143 = vsel %vm1058, %v1142, %v1118
        %v1144 = vsel %vm1057, %v316, %v1141
        %v1145 = vsel %vm1057, 0, %v1143
        %v1146 = vcosq.f32.pop %v1144
        %v1147 = vsinq.f32.pop %v1144
        %vm1148 = vweird.f32 %v316
        %v1149 = vand.u32 %v1145, 3
        %vm1150 = vcmp.lt.s32.totalorder %v1149, 2
        %vm1151 = vcmp.eq.s32.totalorder %v1149, 0
        %v1152 = vxor.u32 %v1147, 2147483648
        %v1153 = vsel %vm1151, %v1146, %v1152
        %vm1154 = vcmp.eq.s32.totalorder %v1149, 2
        %v1155 = vxor.u32 %v1146, 2147483648
        %v1156 = vsel %vm1154, %v1155, %v1147
        %v1157 = vsel %vm1150, %v1153, %v1156
        %v1158 = vsel %vm1148, nan, %v1157
        %v1159 = vmul.f32 %v320, %v320
        %v1160 = vmul.f32 %v322, %v322
        %v1161 = vmul.f32 %v324, %v324
        %v1162 = vmul.f32 %v326, %v326
        %v1163 = vmul.f32 %v328, %v328
        %v1164 = vmul.f32 %v330, %v330
        %v1165 = vmul.f32 %v332, %v332
        %v1166 = vmul.f32 %v334, %v334
        %v1167 = vsub.f32 0.0, %v1159
        %v1168 = vsub.f32 0.0, %v1160
        %v1169 = vsub.f32 0.0, %v1161
        %v1170 = vsub.f32 0.0, %v1162
        %v1171 = vsub.f32 0.0, %v1163
        %v1172 = vsub.f32 0.0, %v1164
        %v1173 = vsub.f32 0.0, %v1165
        %v1174 = vsub.f32 0.0, %v1166
        %v1175 = vmul.f32 %v1167, 1.442695
        %v1176 = vpow.pop %v1175
        %v1177 = vmul.f32 %v1168, 1.442695
        %v1178 = vpow.pop %v1177
        %v1179 = vmul.f32 %v1169, 1.442695
        %v1180 = vpow.pop %v1179
        %v1181 = vmul.f32 %v1170, 1.442695
        %v1182 = vpow.pop %v1181
        %v1183 = vmul.f32 %v1171, 1.442695
        %v1184 = vpow.pop %v1183
        %v1185 = vmul.f32 %v1172, 1.442695
        %v1186 = vpow.pop %v1185
        %v1187 = vmul.f32 %v1173, 1.442695
        %v1188 = vpow.pop %v1187
        %v1189 = vmul.f32 %v1174, 1.442695
        %v1190 = vpow.pop %v1189
        %v1191 = vmul.f32 %v437, %v1176
        %v1192 = vmul.f32 %v540, %v1178
        %v1193 = vmul.f32 %v643, %v1180
        %v1194 = vmul.f32 %v746, %v1182
        %v1195 = vmul.f32 %v849, %v1184
        %v1196 = vmul.f32 %v952, %v1186
        %v1197 = vmul.f32 %v1055, %v1188
        %v1198 = vmul.f32 %v1158, %v1190
        %1199 = vst [vmem:[%s164] sm:$0xff] %v1191
        %1200 = vst [vmem:[%s164 + $0x8] sm:$0xff] %v1192
        %1201 = vst [vmem:[%s164 + $0x10] sm:$0xff] %v1193
        %1202 = vst [vmem:[%s164 + $0x18] sm:$0xff] %v1194
        %1203 = vst [vmem:[%s164 + $0x20] sm:$0xff] %v1195
        %1204 = vst [vmem:[%s164 + $0x28] sm:$0xff] %v1196
        %1205 = vst [vmem:[%s164 + $0x30] sm:$0xff] %v1197
        %1206 = vst [vmem:[%s164 + $0x38] sm:$0xff] %v1198
        %s1207 = sand.u32 %s93, 1
        %s1208 = scalar_lea.sflag [#allocation3], %s1207
        %s1209 = sand.u32 %s93, 1
        %s1210 = smul.addr %s1209, 64
        %s1211 = scalar_lea.vmem [#allocation2], %s1210
        // Predicated region
        $region33: #{tpu_custom_call.1} parent=31 // pred_check
          %p1212 = pneg %p103
        $region34: #{tpu_custom_call.1} parent=31 // pred_check_branch
          %1214 = sbr.rel (%p1212) target = $region36
        $region35: #{tpu_custom_call.1} parent=31 // pred_region
          %s1215 = smul.u32 8, %s17
          %s1217 = ssub.s32 1024, 1024
          %1218 = vsyncadd %s1208, %s1217
          %s1219 = smul.addr %s1215, 128
          %s1220 = scalar_lea.hbm %s3, %s1219
          %s1221 = sshll.u32 %s1211, 4
          %s1222 = int_to_ptr.vmem [resolvable:$true] %s1221
          %1227 = dma.vmem_to_hbm [thread:$0]  %s1222, 1024, %s1220, %s1208, 128, 128, 8
        $region36: #{tpu_custom_call.1} parent=31 // pred_fallthru
          _
      $region32: #{tpu_custom_call.1} parent=5 // pred_fallthru
        _
      %p1228 = scmp.le.s32.totalorder 2, %s12
      // Predicated region
      $region37: #{tpu_custom_call.1} parent=5 // pred_check
        %p1229 = pneg %p1228
      $region38: #{tpu_custom_call.1} parent=5 // pred_check_branch
        %1231 = sbr.rel (%p1229) target = $region40
      $region39: #{tpu_custom_call.1} parent=5 // pred_region
        %s1232 = ssub.s32 %s12, 2
        // Predicated region
        $region41: #{tpu_custom_call.1} parent=39 // pred_check
          %p1233 = pneg %p109
        $region42: #{tpu_custom_call.1} parent=39 // pred_check_branch
          %1235 = sbr.rel (%p1233) target = $region44
        $region43: #{tpu_custom_call.1} parent=39 // pred_region
          %s1236 = sand.u32 %s94, 1
          %s1237 = scalar_lea.sflag [#allocation3], %s1236
          %s1238 = sand.u32 %s94, 1
          %s1239 = smul.addr %s1238, 64
          %s1240 = scalar_lea.vmem [#allocation2], %s1239
          %1241 = dma.done %s1237, 1024
        $region44: #{tpu_custom_call.1} parent=39 // pred_fallthru
          _
      $region40: #{tpu_custom_call.1} parent=5 // pred_fallthru
        _
    $region6: #{tpu_custom_call.1} parent=1 // loop_footer
      %s16 = sadd.s32 1, %s12
    $region7: #{tpu_custom_call.1} parent=1 // loop_footer_branch
      %11 = sbr.rel target = $region3
    $region8: #{tpu_custom_call.1} parent=1 // loop_exit
      _
    %1242 = vsyncpa [#allocation3], 1
    %s1243 = scalar_lea.sflag [#allocation3], 1
    %1244 = vsyncpa %s1243, 1

</llo_original>
